<compile_context>
chip_gen: v6e
topology: v6e:2x2x1
jax: 0.10.0
libtpu: 0.0.40
codegen_flags: <defaults>
</compile_context>

<pallas_src>
import jax
import jax.numpy as jnp
from jax import lax
from jax.experimental import pallas as pl
from jax.experimental.pallas import tpu as pltpu


def _weather_kernel(x_ref, w_ref, fc_ref, out_ref):
    # x_ref:  (L*N, I)  time-major, flattened over (L, N)
    # w_ref:  (I+H+1, 4H)  rows [0:I)=wx, [I:I+H)=wh, [I+H]=b   (g-cols * 2)
    # fc_ref: (H+1, I)     rows [0:H)=wfc, [H]=bfc
    # out_ref:(N, OUT)     lanes [0:H)=h, [H:2H)=c, [2H:2H+I)=y, rest zero-pad
    LN, I = x_ref.shape
    G = w_ref.shape[1]            # 4H
    H = G // 4
    N = out_ref.shape[0]
    L = LN // N
    OUT = out_ref.shape[1]

    wx = w_ref[0:I, :]            # (I, 4H)
    wh = w_ref[I:I + H, :]        # (H, 4H)
    b = w_ref[I + H:I + H + 1, :]  # (1, 4H)

    # --- Hoisted input projection: off the serial chain, one MXU pass. ---
    xg = jnp.dot(x_ref[...], wx, preferred_element_type=jnp.float32) + b  # (L*N, 4H)

    # Lane mask selecting the g-gate columns [2H, 3H) of the fused gate block.
    lane = lax.broadcasted_iota(jnp.int32, (N, G), 1)
    g_mask = (lane >= 2 * H) & (lane < 3 * H)

    def activations(gates):
        # One full-tile sigmoid; tanh for the g gate is recovered via
        # tanh(g) = 2*sigmoid(2g) - 1 (g columns were pre-scaled by 2).
        s = jax.nn.sigmoid(gates)
        acts = jnp.where(g_mask, 2.0 * s - 1.0, s)
        i_g = acts[:, 0 * H:1 * H]
        f_g = acts[:, 1 * H:2 * H]
        g_g = acts[:, 2 * H:3 * H]
        o_g = acts[:, 3 * H:4 * H]
        return i_g, f_g, g_g, o_g

    # --- Peeled t = 0: h0 = c0 = 0 -> no recurrent matmul, no f*c term. ---
    i_g, _, g_g, o_g = activations(xg[0:N, :])
    c = i_g * g_g
    h = o_g * jnp.tanh(c)

    # --- Remaining steps, fully unrolled (L static & tiny).  Only the
    #     h @ wh matmul + gate math sit on the serial dependence chain. ---
    for t in range(1, L):
        gates = xg[t * N:(t + 1) * N, :] + jnp.dot(
            h, wh, preferred_element_type=jnp.float32)
        i_g, f_g, g_g, o_g = activations(gates)
        c = f_g * c + i_g * g_g
        h = o_g * jnp.tanh(c)

    # --- Linear head. ---
    wfc = fc_ref[0:H, :]          # (H, I)
    bfc = fc_ref[H:H + 1, :]      # (1, I)
    y = jnp.dot(h, wfc, preferred_element_type=jnp.float32) + bfc  # (N, I)

    # --- Single lane-dense packed store: [h | c | y | zero-pad]. ---
    pad = jnp.zeros((N, OUT - 2 * H - I), jnp.float32)
    out_ref[...] = jnp.concatenate([h, c, y, pad], axis=-1)


@jax.jit
def weather_model_forward(x, wx, wh, b, wfc, bfc):
    """x: (L, N, I) time-major.  Returns (y (N, I), h (N, H), c (N, H))."""
    L, N, I = x.shape
    H = wh.shape[0]
    G = 4 * H

    # Pre-scale the g-gate columns by 2 (enables the single-sigmoid rewrite).
    gscale = jnp.ones((1, G), jnp.float32).at[:, 2 * H:3 * H].set(2.0)
    w_pack = jnp.concatenate([wx * gscale, wh * gscale, b * gscale], axis=0)
    fc_pack = jnp.concatenate([wfc, bfc], axis=0)

    # Layout-only flatten so the kernel's hoisted projection is a single 2-D
    # matmul (avoids an in-kernel sublane reshape).
    x2 = x.reshape(L * N, I)

    out_lanes = max(128, ((2 * H + I + 127) // 128) * 128)
    vmem = pl.BlockSpec(memory_space=pltpu.MemorySpace.VMEM)

    out = pl.pallas_call(
        _weather_kernel,
        out_shape=jax.ShapeDtypeStruct((N, out_lanes), jnp.float32),
        in_specs=[vmem, vmem, vmem],
        out_specs=vmem,
    )(x2, w_pack, fc_pack)

    h = out[:, 0:H]
    c = out[:, H:2 * H]
    y = out[:, 2 * H:2 * H + I]
    return y, h, c


def _reference_forward(x, wx, wh, b, wfc, bfc):
    """Pure-JAX reference matching torch.nn.LSTMCell + Linear semantics."""
    L, N, I = x.shape
    H = wh.shape[0]
    h = jnp.zeros((N, H), jnp.float32)
    c = jnp.zeros((N, H), jnp.float32)
    for t in range(L):
        gates = x[t] @ wx + h @ wh + b          # (N, 4H), gate order i,f,g,o
        i_g = jax.nn.sigmoid(gates[:, 0 * H:1 * H])
        f_g = jax.nn.sigmoid(gates[:, 1 * H:2 * H])
        g_g = jnp.tanh(gates[:, 2 * H:3 * H])
        o_g = jax.nn.sigmoid(gates[:, 3 * H:4 * H])
        c = f_g * c + i_g * g_g
        h = o_g * jnp.tanh(c)
    y = h @ wfc + bfc
    return y, h, c


def init_params(key, input_size, hidden_size):
    """Init mimicking PyTorch LSTMCell / Linear (uniform(-1/sqrt(H), 1/sqrt(H))).

    Gate weights are fused along the output dim in PyTorch gate order
    (i, f, g, o) and stored transposed as (in_features, 4*hidden)."""
    k = 1.0 / jnp.sqrt(hidden_size)
    ks = jax.random.split(key, 6)
    H4 = 4 * hidden_size
    wx = jax.random.uniform(ks[0], (input_size, H4), jnp.float32, -k, k)
    wh = jax.random.uniform(ks[1], (hidden_size, H4), jnp.float32, -k, k)
    b_ih = jax.random.uniform(ks[2], (1, H4), jnp.float32, -k, k)
    b_hh = jax.random.uniform(ks[3], (1, H4), jnp.float32, -k, k)
    b = b_ih + b_hh
    wfc = jax.random.uniform(ks[4], (hidden_size, input_size),
                             jnp.float32, -k, k)
    bfc = jax.random.uniform(ks[5], (1, input_size), jnp.float32, -k, k)
    return wx, wh, b, wfc, bfc


if __name__ == "__main__":
    # Small shapes consistent with the module: seq=8, batch=4, input=8, hidden=32
    # (4H = 128 exactly fills the 128-lane vreg / MXU output).
    L, N, INPUT, HIDDEN = 8, 4, 8, 32

    key = jax.random.PRNGKey(0)
    k_x, k_p = jax.random.split(key)
    x = jax.random.normal(k_x, (L, N, INPUT), jnp.float32)
    wx, wh, b, wfc, bfc = init_params(k_p, INPUT, HIDDEN)

    y, h, c = weather_model_forward(x, wx, wh, b, wfc, bfc)
    jax.block_until_ready((y, h, c))

    y_ref, h_ref, c_ref = _reference_forward(x, wx, wh, b, wfc, bfc)
    # 2e-5 tolerance: the g gate uses the exact identity tanh(x)=2*sigmoid(2x)-1,
    # which rounds slightly differently from a direct tanh.
    assert jnp.allclose(y, y_ref, atol=2e-5, rtol=2e-5)
    assert jnp.allclose(h, h_ref, atol=2e-5, rtol=2e-5)
    assert jnp.allclose(c, c_ref, atol=2e-5, rtol=2e-5)

    print("KERNEL_OK")
</pallas_src>

<mosaic_0001>
module attributes {stable_mosaic.version = 11 : i64} {
  func.func @_weather_kernel(%arg0: memref<32x8xf32, #tpu.memory_space<vmem>>, %arg1: memref<41x128xf32, #tpu.memory_space<vmem>>, %arg2: memref<33x8xf32, #tpu.memory_space<vmem>>, %arg3: memref<4x128xf32, #tpu.memory_space<vmem>>) attributes {dimension_semantics = [], scalar_prefetch = 0 : i64, scratch_operands = 0 : i64, tpu.core_type = #tpu.core_type<tc>} {
    %c0 = arith.constant 0 : index
    %c0_0 = arith.constant 0 : index
    %0 = vector.load %arg1[%c0, %c0_0] : memref<41x128xf32, #tpu.memory_space<vmem>>, vector<8x128xf32>
    %c8 = arith.constant 8 : index
    %c0_1 = arith.constant 0 : index
    %1 = vector.load %arg1[%c8, %c0_1] : memref<41x128xf32, #tpu.memory_space<vmem>>, vector<32x128xf32>
    %c40 = arith.constant 40 : index
    %c0_2 = arith.constant 0 : index
    %2 = vector.load %arg1[%c40, %c0_2] : memref<41x128xf32, #tpu.memory_space<vmem>>, vector<1x128xf32>
    %c0_3 = arith.constant 0 : index
    %c0_4 = arith.constant 0 : index
    %3 = vector.load %arg0[%c0_3, %c0_4] : memref<32x8xf32, #tpu.memory_space<vmem>>, vector<32x8xf32>
    %cst = arith.constant dense<0.000000e+00> : vector<32x128xf32>
    %4 = tpu.matmul %3, %0, %cst {dimension_numbers = #tpu.dot_dimension_numbers<[1], [0], [0], [1], [0, 0, 1, 1], [], []>} : vector<32x8xf32>, vector<8x128xf32>, vector<32x128xf32> -> vector<32x128xf32>
    %5 = vector.broadcast %2 : vector<1x128xf32> to vector<32x128xf32>
    %6 = arith.addf %4, %5 : vector<32x128xf32>
    %7 = tpu.iota {dimensions = array<i32: 1>} : vector<4x128xi32>
    %c64_i32 = arith.constant 64 : i32
    %8 = vector.broadcast %c64_i32 : i32 to vector<4x128xi32>
    %9 = arith.cmpi sge, %7, %8 : vector<4x128xi32>
    %c96_i32 = arith.constant 96 : i32
    %10 = vector.broadcast %c96_i32 : i32 to vector<4x128xi32>
    %11 = arith.cmpi slt, %7, %10 : vector<4x128xi32>
    %12 = arith.andi %9, %11 : vector<4x128xi1>
    %13 = vector.extract_strided_slice %6 {offsets = [0, 0], sizes = [4, 128], strides = [1, 1]} : vector<32x128xf32> to vector<4x128xf32>
    %14 = arith.negf %13 : vector<4x128xf32>
    %15 = math.exp %14 : vector<4x128xf32>
    %cst_5 = arith.constant 1.000000e+00 : f32
    %16 = vector.broadcast %cst_5 : f32 to vector<4x128xf32>
    %17 = arith.addf %16, %15 : vector<4x128xf32>
    %18 = arith.divf %16, %17 : vector<4x128xf32>
    %cst_6 = arith.constant 2.000000e+00 : f32
    %19 = vector.broadcast %cst_6 : f32 to vector<4x128xf32>
    %20 = arith.mulf %19, %18 : vector<4x128xf32>
    %cst_7 = arith.constant 1.000000e+00 : f32
    %21 = vector.broadcast %cst_7 : f32 to vector<4x128xf32>
    %22 = arith.subf %20, %21 : vector<4x128xf32>
    %23 = arith.select %12, %22, %18 : vector<4x128xi1>, vector<4x128xf32>
    %24 = vector.extract_strided_slice %23 {offsets = [0, 0], sizes = [4, 32], strides = [1, 1]} : vector<4x128xf32> to vector<4x32xf32>
    %25 = vector.extract_strided_slice %23 {offsets = [0, 64], sizes = [4, 32], strides = [1, 1]} : vector<4x128xf32> to vector<4x32xf32>
    %26 = vector.extract_strided_slice %23 {offsets = [0, 96], sizes = [4, 32], strides = [1, 1]} : vector<4x128xf32> to vector<4x32xf32>
    %27 = arith.mulf %24, %25 : vector<4x32xf32>
    %28 = math.tanh %27 : vector<4x32xf32>
    %29 = arith.mulf %26, %28 : vector<4x32xf32>
    %30 = vector.extract_strided_slice %6 {offsets = [4, 0], sizes = [4, 128], strides = [1, 1]} : vector<32x128xf32> to vector<4x128xf32>
    %cst_8 = arith.constant dense<0.000000e+00> : vector<4x128xf32>
    %31 = tpu.matmul %29, %1, %cst_8 {dimension_numbers = #tpu.dot_dimension_numbers<[1], [0], [0], [1], [0, 0, 1, 1], [], []>} : vector<4x32xf32>, vector<32x128xf32>, vector<4x128xf32> -> vector<4x128xf32>
    %32 = arith.addf %30, %31 : vector<4x128xf32>
    %33 = arith.negf %32 : vector<4x128xf32>
    %34 = math.exp %33 : vector<4x128xf32>
    %cst_9 = arith.constant 1.000000e+00 : f32
    %35 = vector.broadcast %cst_9 : f32 to vector<4x128xf32>
    %36 = arith.addf %35, %34 : vector<4x128xf32>
    %37 = arith.divf %35, %36 : vector<4x128xf32>
    %cst_10 = arith.constant 2.000000e+00 : f32
    %38 = vector.broadcast %cst_10 : f32 to vector<4x128xf32>
    %39 = arith.mulf %38, %37 : vector<4x128xf32>
    %cst_11 = arith.constant 1.000000e+00 : f32
    %40 = vector.broadcast %cst_11 : f32 to vector<4x128xf32>
    %41 = arith.subf %39, %40 : vector<4x128xf32>
    %42 = arith.select %12, %41, %37 : vector<4x128xi1>, vector<4x128xf32>
    %43 = vector.extract_strided_slice %42 {offsets = [0, 0], sizes = [4, 32], strides = [1, 1]} : vector<4x128xf32> to vector<4x32xf32>
    %44 = vector.extract_strided_slice %42 {offsets = [0, 32], sizes = [4, 32], strides = [1, 1]} : vector<4x128xf32> to vector<4x32xf32>
    %45 = vector.extract_strided_slice %42 {offsets = [0, 64], sizes = [4, 32], strides = [1, 1]} : vector<4x128xf32> to vector<4x32xf32>
    %46 = vector.extract_strided_slice %42 {offsets = [0, 96], sizes = [4, 32], strides = [1, 1]} : vector<4x128xf32> to vector<4x32xf32>
    %47 = arith.mulf %44, %27 : vector<4x32xf32>
    %48 = arith.mulf %43, %45 : vector<4x32xf32>
    %49 = arith.addf %47, %48 : vector<4x32xf32>
    %50 = math.tanh %49 : vector<4x32xf32>
    %51 = arith.mulf %46, %50 : vector<4x32xf32>
    %52 = vector.extract_strided_slice %6 {offsets = [8, 0], sizes = [4, 128], strides = [1, 1]} : vector<32x128xf32> to vector<4x128xf32>
    %cst_12 = arith.constant dense<0.000000e+00> : vector<4x128xf32>
    %53 = tpu.matmul %51, %1, %cst_12 {dimension_numbers = #tpu.dot_dimension_numbers<[1], [0], [0], [1], [0, 0, 1, 1], [], []>} : vector<4x32xf32>, vector<32x128xf32>, vector<4x128xf32> -> vector<4x128xf32>
    %54 = arith.addf %52, %53 : vector<4x128xf32>
    %55 = arith.negf %54 : vector<4x128xf32>
    %56 = math.exp %55 : vector<4x128xf32>
    %cst_13 = arith.constant 1.000000e+00 : f32
    %57 = vector.broadcast %cst_13 : f32 to vector<4x128xf32>
    %58 = arith.addf %57, %56 : vector<4x128xf32>
    %59 = arith.divf %57, %58 : vector<4x128xf32>
    %cst_14 = arith.constant 2.000000e+00 : f32
    %60 = vector.broadcast %cst_14 : f32 to vector<4x128xf32>
    %61 = arith.mulf %60, %59 : vector<4x128xf32>
    %cst_15 = arith.constant 1.000000e+00 : f32
    %62 = vector.broadcast %cst_15 : f32 to vector<4x128xf32>
    %63 = arith.subf %61, %62 : vector<4x128xf32>
    %64 = arith.select %12, %63, %59 : vector<4x128xi1>, vector<4x128xf32>
    %65 = vector.extract_strided_slice %64 {offsets = [0, 0], sizes = [4, 32], strides = [1, 1]} : vector<4x128xf32> to vector<4x32xf32>
    %66 = vector.extract_strided_slice %64 {offsets = [0, 32], sizes = [4, 32], strides = [1, 1]} : vector<4x128xf32> to vector<4x32xf32>
    %67 = vector.extract_strided_slice %64 {offsets = [0, 64], sizes = [4, 32], strides = [1, 1]} : vector<4x128xf32> to vector<4x32xf32>
    %68 = vector.extract_strided_slice %64 {offsets = [0, 96], sizes = [4, 32], strides = [1, 1]} : vector<4x128xf32> to vector<4x32xf32>
    %69 = arith.mulf %66, %49 : vector<4x32xf32>
    %70 = arith.mulf %65, %67 : vector<4x32xf32>
    %71 = arith.addf %69, %70 : vector<4x32xf32>
    %72 = math.tanh %71 : vector<4x32xf32>
    %73 = arith.mulf %68, %72 : vector<4x32xf32>
    %74 = vector.extract_strided_slice %6 {offsets = [12, 0], sizes = [4, 128], strides = [1, 1]} : vector<32x128xf32> to vector<4x128xf32>
    %cst_16 = arith.constant dense<0.000000e+00> : vector<4x128xf32>
    %75 = tpu.matmul %73, %1, %cst_16 {dimension_numbers = #tpu.dot_dimension_numbers<[1], [0], [0], [1], [0, 0, 1, 1], [], []>} : vector<4x32xf32>, vector<32x128xf32>, vector<4x128xf32> -> vector<4x128xf32>
    %76 = arith.addf %74, %75 : vector<4x128xf32>
    %77 = arith.negf %76 : vector<4x128xf32>
    %78 = math.exp %77 : vector<4x128xf32>
    %cst_17 = arith.constant 1.000000e+00 : f32
    %79 = vector.broadcast %cst_17 : f32 to vector<4x128xf32>
    %80 = arith.addf %79, %78 : vector<4x128xf32>
    %81 = arith.divf %79, %80 : vector<4x128xf32>
    %cst_18 = arith.constant 2.000000e+00 : f32
    %82 = vector.broadcast %cst_18 : f32 to vector<4x128xf32>
    %83 = arith.mulf %82, %81 : vector<4x128xf32>
    %cst_19 = arith.constant 1.000000e+00 : f32
    %84 = vector.broadcast %cst_19 : f32 to vector<4x128xf32>
    %85 = arith.subf %83, %84 : vector<4x128xf32>
    %86 = arith.select %12, %85, %81 : vector<4x128xi1>, vector<4x128xf32>
    %87 = vector.extract_strided_slice %86 {offsets = [0, 0], sizes = [4, 32], strides = [1, 1]} : vector<4x128xf32> to vector<4x32xf32>
    %88 = vector.extract_strided_slice %86 {offsets = [0, 32], sizes = [4, 32], strides = [1, 1]} : vector<4x128xf32> to vector<4x32xf32>
    %89 = vector.extract_strided_slice %86 {offsets = [0, 64], sizes = [4, 32], strides = [1, 1]} : vector<4x128xf32> to vector<4x32xf32>
    %90 = vector.extract_strided_slice %86 {offsets = [0, 96], sizes = [4, 32], strides = [1, 1]} : vector<4x128xf32> to vector<4x32xf32>
    %91 = arith.mulf %88, %71 : vector<4x32xf32>
    %92 = arith.mulf %87, %89 : vector<4x32xf32>
    %93 = arith.addf %91, %92 : vector<4x32xf32>
    %94 = math.tanh %93 : vector<4x32xf32>
    %95 = arith.mulf %90, %94 : vector<4x32xf32>
    %96 = vector.extract_strided_slice %6 {offsets = [16, 0], sizes = [4, 128], strides = [1, 1]} : vector<32x128xf32> to vector<4x128xf32>
    %cst_20 = arith.constant dense<0.000000e+00> : vector<4x128xf32>
    %97 = tpu.matmul %95, %1, %cst_20 {dimension_numbers = #tpu.dot_dimension_numbers<[1], [0], [0], [1], [0, 0, 1, 1], [], []>} : vector<4x32xf32>, vector<32x128xf32>, vector<4x128xf32> -> vector<4x128xf32>
    %98 = arith.addf %96, %97 : vector<4x128xf32>
    %99 = arith.negf %98 : vector<4x128xf32>
    %100 = math.exp %99 : vector<4x128xf32>
    %cst_21 = arith.constant 1.000000e+00 : f32
    %101 = vector.broadcast %cst_21 : f32 to vector<4x128xf32>
    %102 = arith.addf %101, %100 : vector<4x128xf32>
    %103 = arith.divf %101, %102 : vector<4x128xf32>
    %cst_22 = arith.constant 2.000000e+00 : f32
    %104 = vector.broadcast %cst_22 : f32 to vector<4x128xf32>
    %105 = arith.mulf %104, %103 : vector<4x128xf32>
    %cst_23 = arith.constant 1.000000e+00 : f32
    %106 = vector.broadcast %cst_23 : f32 to vector<4x128xf32>
    %107 = arith.subf %105, %106 : vector<4x128xf32>
    %108 = arith.select %12, %107, %103 : vector<4x128xi1>, vector<4x128xf32>
    %109 = vector.extract_strided_slice %108 {offsets = [0, 0], sizes = [4, 32], strides = [1, 1]} : vector<4x128xf32> to vector<4x32xf32>
    %110 = vector.extract_strided_slice %108 {offsets = [0, 32], sizes = [4, 32], strides = [1, 1]} : vector<4x128xf32> to vector<4x32xf32>
    %111 = vector.extract_strided_slice %108 {offsets = [0, 64], sizes = [4, 32], strides = [1, 1]} : vector<4x128xf32> to vector<4x32xf32>
    %112 = vector.extract_strided_slice %108 {offsets = [0, 96], sizes = [4, 32], strides = [1, 1]} : vector<4x128xf32> to vector<4x32xf32>
    %113 = arith.mulf %110, %93 : vector<4x32xf32>
    %114 = arith.mulf %109, %111 : vector<4x32xf32>
    %115 = arith.addf %113, %114 : vector<4x32xf32>
    %116 = math.tanh %115 : vector<4x32xf32>
    %117 = arith.mulf %112, %116 : vector<4x32xf32>
    %118 = vector.extract_strided_slice %6 {offsets = [20, 0], sizes = [4, 128], strides = [1, 1]} : vector<32x128xf32> to vector<4x128xf32>
    %cst_24 = arith.constant dense<0.000000e+00> : vector<4x128xf32>
    %119 = tpu.matmul %117, %1, %cst_24 {dimension_numbers = #tpu.dot_dimension_numbers<[1], [0], [0], [1], [0, 0, 1, 1], [], []>} : vector<4x32xf32>, vector<32x128xf32>, vector<4x128xf32> -> vector<4x128xf32>
    %120 = arith.addf %118, %119 : vector<4x128xf32>
    %121 = arith.negf %120 : vector<4x128xf32>
    %122 = math.exp %121 : vector<4x128xf32>
    %cst_25 = arith.constant 1.000000e+00 : f32
    %123 = vector.broadcast %cst_25 : f32 to vector<4x128xf32>
    %124 = arith.addf %123, %122 : vector<4x128xf32>
    %125 = arith.divf %123, %124 : vector<4x128xf32>
    %cst_26 = arith.constant 2.000000e+00 : f32
    %126 = vector.broadcast %cst_26 : f32 to vector<4x128xf32>
    %127 = arith.mulf %126, %125 : vector<4x128xf32>
    %cst_27 = arith.constant 1.000000e+00 : f32
    %128 = vector.broadcast %cst_27 : f32 to vector<4x128xf32>
    %129 = arith.subf %127, %128 : vector<4x128xf32>
    %130 = arith.select %12, %129, %125 : vector<4x128xi1>, vector<4x128xf32>
    %131 = vector.extract_strided_slice %130 {offsets = [0, 0], sizes = [4, 32], strides = [1, 1]} : vector<4x128xf32> to vector<4x32xf32>
    %132 = vector.extract_strided_slice %130 {offsets = [0, 32], sizes = [4, 32], strides = [1, 1]} : vector<4x128xf32> to vector<4x32xf32>
    %133 = vector.extract_strided_slice %130 {offsets = [0, 64], sizes = [4, 32], strides = [1, 1]} : vector<4x128xf32> to vector<4x32xf32>
    %134 = vector.extract_strided_slice %130 {offsets = [0, 96], sizes = [4, 32], strides = [1, 1]} : vector<4x128xf32> to vector<4x32xf32>
    %135 = arith.mulf %132, %115 : vector<4x32xf32>
    %136 = arith.mulf %131, %133 : vector<4x32xf32>
    %137 = arith.addf %135, %136 : vector<4x32xf32>
    %138 = math.tanh %137 : vector<4x32xf32>
    %139 = arith.mulf %134, %138 : vector<4x32xf32>
    %140 = vector.extract_strided_slice %6 {offsets = [24, 0], sizes = [4, 128], strides = [1, 1]} : vector<32x128xf32> to vector<4x128xf32>
    %cst_28 = arith.constant dense<0.000000e+00> : vector<4x128xf32>
    %141 = tpu.matmul %139, %1, %cst_28 {dimension_numbers = #tpu.dot_dimension_numbers<[1], [0], [0], [1], [0, 0, 1, 1], [], []>} : vector<4x32xf32>, vector<32x128xf32>, vector<4x128xf32> -> vector<4x128xf32>
    %142 = arith.addf %140, %141 : vector<4x128xf32>
    %143 = arith.negf %142 : vector<4x128xf32>
    %144 = math.exp %143 : vector<4x128xf32>
    %cst_29 = arith.constant 1.000000e+00 : f32
    %145 = vector.broadcast %cst_29 : f32 to vector<4x128xf32>
    %146 = arith.addf %145, %144 : vector<4x128xf32>
    %147 = arith.divf %145, %146 : vector<4x128xf32>
    %cst_30 = arith.constant 2.000000e+00 : f32
    %148 = vector.broadcast %cst_30 : f32 to vector<4x128xf32>
    %149 = arith.mulf %148, %147 : vector<4x128xf32>
    %cst_31 = arith.constant 1.000000e+00 : f32
    %150 = vector.broadcast %cst_31 : f32 to vector<4x128xf32>
    %151 = arith.subf %149, %150 : vector<4x128xf32>
    %152 = arith.select %12, %151, %147 : vector<4x128xi1>, vector<4x128xf32>
    %153 = vector.extract_strided_slice %152 {offsets = [0, 0], sizes = [4, 32], strides = [1, 1]} : vector<4x128xf32> to vector<4x32xf32>
    %154 = vector.extract_strided_slice %152 {offsets = [0, 32], sizes = [4, 32], strides = [1, 1]} : vector<4x128xf32> to vector<4x32xf32>
    %155 = vector.extract_strided_slice %152 {offsets = [0, 64], sizes = [4, 32], strides = [1, 1]} : vector<4x128xf32> to vector<4x32xf32>
    %156 = vector.extract_strided_slice %152 {offsets = [0, 96], sizes = [4, 32], strides = [1, 1]} : vector<4x128xf32> to vector<4x32xf32>
    %157 = arith.mulf %154, %137 : vector<4x32xf32>
    %158 = arith.mulf %153, %155 : vector<4x32xf32>
    %159 = arith.addf %157, %158 : vector<4x32xf32>
    %160 = math.tanh %159 : vector<4x32xf32>
    %161 = arith.mulf %156, %160 : vector<4x32xf32>
    %162 = vector.extract_strided_slice %6 {offsets = [28, 0], sizes = [4, 128], strides = [1, 1]} : vector<32x128xf32> to vector<4x128xf32>
    %cst_32 = arith.constant dense<0.000000e+00> : vector<4x128xf32>
    %163 = tpu.matmul %161, %1, %cst_32 {dimension_numbers = #tpu.dot_dimension_numbers<[1], [0], [0], [1], [0, 0, 1, 1], [], []>} : vector<4x32xf32>, vector<32x128xf32>, vector<4x128xf32> -> vector<4x128xf32>
    %164 = arith.addf %162, %163 : vector<4x128xf32>
    %165 = arith.negf %164 : vector<4x128xf32>
    %166 = math.exp %165 : vector<4x128xf32>
    %cst_33 = arith.constant 1.000000e+00 : f32
    %167 = vector.broadcast %cst_33 : f32 to vector<4x128xf32>
    %168 = arith.addf %167, %166 : vector<4x128xf32>
    %169 = arith.divf %167, %168 : vector<4x128xf32>
    %cst_34 = arith.constant 2.000000e+00 : f32
    %170 = vector.broadcast %cst_34 : f32 to vector<4x128xf32>
    %171 = arith.mulf %170, %169 : vector<4x128xf32>
    %cst_35 = arith.constant 1.000000e+00 : f32
    %172 = vector.broadcast %cst_35 : f32 to vector<4x128xf32>
    %173 = arith.subf %171, %172 : vector<4x128xf32>
    %174 = arith.select %12, %173, %169 : vector<4x128xi1>, vector<4x128xf32>
    %175 = vector.extract_strided_slice %174 {offsets = [0, 0], sizes = [4, 32], strides = [1, 1]} : vector<4x128xf32> to vector<4x32xf32>
    %176 = vector.extract_strided_slice %174 {offsets = [0, 32], sizes = [4, 32], strides = [1, 1]} : vector<4x128xf32> to vector<4x32xf32>
    %177 = vector.extract_strided_slice %174 {offsets = [0, 64], sizes = [4, 32], strides = [1, 1]} : vector<4x128xf32> to vector<4x32xf32>
    %178 = vector.extract_strided_slice %174 {offsets = [0, 96], sizes = [4, 32], strides = [1, 1]} : vector<4x128xf32> to vector<4x32xf32>
    %179 = arith.mulf %176, %159 : vector<4x32xf32>
    %180 = arith.mulf %175, %177 : vector<4x32xf32>
    %181 = arith.addf %179, %180 : vector<4x32xf32>
    %182 = math.tanh %181 : vector<4x32xf32>
    %183 = arith.mulf %178, %182 : vector<4x32xf32>
    %c0_36 = arith.constant 0 : index
    %c0_37 = arith.constant 0 : index
    %184 = vector.load %arg2[%c0_36, %c0_37] : memref<33x8xf32, #tpu.memory_space<vmem>>, vector<32x8xf32>
    %c32 = arith.constant 32 : index
    %c0_38 = arith.constant 0 : index
    %185 = vector.load %arg2[%c32, %c0_38] : memref<33x8xf32, #tpu.memory_space<vmem>>, vector<1x8xf32>
    %cst_39 = arith.constant dense<0.000000e+00> : vector<4x8xf32>
    %186 = tpu.matmul %183, %184, %cst_39 {dimension_numbers = #tpu.dot_dimension_numbers<[1], [0], [0], [1], [0, 0, 1, 1], [], []>} : vector<4x32xf32>, vector<32x8xf32>, vector<4x8xf32> -> vector<4x8xf32>
    %187 = vector.broadcast %185 : vector<1x8xf32> to vector<4x8xf32>
    %188 = arith.addf %186, %187 : vector<4x8xf32>
    %cst_40 = arith.constant 0.000000e+00 : f32
    %189 = vector.broadcast %cst_40 : f32 to vector<4x56xf32>
    %190 = tpu.concatenate %183, %181, %188, %189 in 1 : vector<4x32xf32>, vector<4x32xf32>, vector<4x8xf32>, vector<4x56xf32> -> vector<4x128xf32>
    %c0_41 = arith.constant 0 : index
    %c0_42 = arith.constant 0 : index
    %191 = vector.load %arg3[%c0_41, %c0_42] : memref<4x128xf32, #tpu.memory_space<vmem>>, vector<4x128xf32>
    tpu.vector_store %arg3[%c0_41, %c0_42], %190 {strides = array<i32>} : memref<4x128xf32, #tpu.memory_space<vmem>>, vector<4x128xf32>,
    return
  }
}

</mosaic_0001>

<llo_original>
// kernel: weather_model_forward.1
$region0: #{weather_model_forward.1}
  #allocation0 [shape = 'u32[]', space=smem, size = 0x4, offset = 0x4, fixed_abs, tag = 'smem constant byte address 0x4 - core index']
  #allocation1 [shape = 'u32[144,128]{1,0:T(1,128)}', space=vmem, size = 0x12000, scoped, tag = 'internal scratch']
  %s0 = inlined_call_operand.vmem [shape: f32[32,8], index: 0, kind: input, shape index: {}]
  %s1 = inlined_call_operand.vmem [shape: f32[41,128], index: 1, kind: input, shape index: {}]
  %s2 = inlined_call_operand.vmem [shape: f32[33,8], index: 2, kind: input, shape index: {}]
  %s3 = inlined_call_operand.vmem [shape: f32[4,128], index: 3, kind: output, shape index: {}]
  %s4 = sld [smem:[#allocation0]]
  $region22: #{weather_model_forward.1} parent=0
    _
  %s6 = ssub.s32 1, %s4
  %s7 = scalar_select 0, %s6, %s4
  // Predicated region
  $region2: #{weather_model_forward.1} parent=0 // pred_check
    _
  $region3: #{weather_model_forward.1} parent=0 // pred_check_branch
    %9 = sbr.rel (0) target = $region5
  $region4: #{weather_model_forward.1} parent=0 // pred_region
    _
  $region5: #{weather_model_forward.1} parent=0 // pred_fallthru
    _
  // Predicated region
  $region6: #{weather_model_forward.1} parent=0 // pred_check
    _
  $region7: #{weather_model_forward.1} parent=0 // pred_check_branch
    %11 = sbr.rel (0) target = $region9
  $region8: #{weather_model_forward.1} parent=0 // pred_region
    _
  $region9: #{weather_model_forward.1} parent=0 // pred_fallthru
    _
  // Predicated region
  $region10: #{weather_model_forward.1} parent=0 // pred_check
    _
  $region11: #{weather_model_forward.1} parent=0 // pred_check_branch
    %13 = sbr.rel (0) target = $region13
  $region12: #{weather_model_forward.1} parent=0 // pred_region
    _
  $region13: #{weather_model_forward.1} parent=0 // pred_fallthru
    _
  %v14 = vld [vmem:[%s1] sm:$0xff]
  %v15 = vld [vmem:[%s1 + $0x8] sm:$0xff]
  %v16 = vld [vmem:[%s1 + $0x10] sm:$0xff]
  %v17 = vld [vmem:[%s1 + $0x18] sm:$0xff]
  %v18 = vld [vmem:[%s1 + $0x20] sm:$0xff]
  %v19 = vld [vmem:[%s1 + $0x28] sm:$0x1]
  %v20 = vld [vmem:[%s0] sm:$0xff]
  %v21 = vld [vmem:[%s0 + $0x8] sm:$0xff]
  %v22 = vld [vmem:[%s0 + $0x10] sm:$0xff]
  %v23 = vld [vmem:[%s0 + $0x18] sm:$0xff]
  %v24 = vlaneseq
  %v25 = vshrl.u32 %v24, 7
  %v26 = vsub.s32 0, %v25
  %v27 = vrot.slane %v19, %v26
  %vm28 = vcmask 64512
  %v30 = vsel %vm28, %v20, 0
  %v33 = vsel %vm28, %v21, 0
  %v36 = vsel %vm28, %v22, 0
  %v39 = vsel %vm28, %v23, 0
  %41 = vmatprep.subr.mxu0 0.0
  %42 = vmatpush1.msra.mxu0 0.0
  %43 = vmatprep.subr.mxu0 0.0
  %44 = vmatpush1.msra.mxu0 0.0
  %45 = vmatprep.subr.mxu0 0.0
  %46 = vmatpush1.msra.mxu0 0.0
  %47 = vmatprep.subr.mxu0 0.0
  %48 = vmatpush1.msra.mxu0 0.0
  %49 = vmatprep.subr.mxu0 0.0
  %50 = vmatpush1.msra.mxu0 0.0
  %51 = vmatprep.subr.mxu0 0.0
  %52 = vmatpush1.msra.mxu0 0.0
  %53 = vmatprep.subr.mxu0 0.0
  %54 = vmatpush1.msra.mxu0 0.0
  %55 = vmatprep.subr.mxu0 0.0
  %56 = vmatpush1.msra.mxu0 0.0
  %57 = vmatprep.subr.mxu0 0.0
  %58 = vmatpush1.msra.mxu0 0.0
  %59 = vmatprep.subr.mxu0 0.0
  %60 = vmatpush1.msra.mxu0 0.0
  %61 = vmatprep.subr.mxu0 0.0
  %62 = vmatpush1.msra.mxu0 0.0
  %63 = vmatprep.subr.mxu0 0.0
  %64 = vmatpush1.msra.mxu0 0.0
  %65 = vmatprep.subr.mxu0 0.0
  %66 = vmatpush1.msra.mxu0 0.0
  %67 = vmatprep.subr.mxu0 0.0
  %68 = vmatpush1.msra.mxu0 0.0
  %69 = vmatprep.subr.mxu0 0.0
  %70 = vmatpush1.msra.mxu0 0.0
  %71 = vmatprep.subr.mxu0 0.0
  %72 = vmatpush1.msra.mxu0 %v14
  %73 = vmatprep.subr.mxu0 0.0
  %74 = vmatpush2.msra.mxu0 0.0
  %75 = vmatprep.subr.mxu0 0.0
  %76 = vmatpush2.msra.mxu0 0.0
  %77 = vmatprep.subr.mxu0 0.0
  %78 = vmatpush2.msra.mxu0 0.0
  %79 = vmatprep.subr.mxu0 0.0
  %80 = vmatpush2.msra.mxu0 0.0
  %81 = vmatprep.subr.mxu0 0.0
  %82 = vmatpush2.msra.mxu0 0.0
  %83 = vmatprep.subr.mxu0 0.0
  %84 = vmatpush2.msra.mxu0 0.0
  %85 = vmatprep.subr.mxu0 0.0
  %86 = vmatpush2.msra.mxu0 0.0
  %87 = vmatprep.subr.mxu0 0.0
  %88 = vmatpush2.msra.mxu0 0.0
  %89 = vmatprep.subr.mxu0 0.0
  %90 = vmatpush2.msra.mxu0 0.0
  %91 = vmatprep.subr.mxu0 0.0
  %92 = vmatpush2.msra.mxu0 0.0
  %93 = vmatprep.subr.mxu0 0.0
  %94 = vmatpush2.msra.mxu0 0.0
  %95 = vmatprep.subr.mxu0 0.0
  %96 = vmatpush2.msra.mxu0 0.0
  %97 = vmatprep.subr.mxu0 0.0
  %98 = vmatpush2.msra.mxu0 0.0
  %99 = vmatprep.subr.mxu0 0.0
  %100 = vmatpush2.msra.mxu0 0.0
  %101 = vmatprep.subr.mxu0 0.0
  %102 = vmatpush2.msra.mxu0 0.0
  %103 = vmatprep.subr.mxu0 0.0
  %104 = vmatpush2.msra.mxu0 0.0
  %105 = vmatprep.mubr.f32.mxu0 0.0
  %106 = vmatmul.mubr.f32.gmra.mxu0 %v30
  %v107 = vpop.f32.mrf.mxu0
  %v108 = vadd.f32 %v27, %v107
  %v109 = vpop.f32.mrf.mxu0
  %110 = vmatprep.mubr.f32.mxu0 0.0
  %111 = vmatmul.mubr.f32.gmra.mxu0 %v33
  %v112 = vpop.f32.mrf.mxu0
  %v113 = vadd.f32 %v27, %v112
  %v114 = vpop.f32.mrf.mxu0
  %115 = vmatprep.mubr.f32.mxu0 0.0
  %116 = vmatmul.mubr.f32.gmra.mxu0 %v36
  %v117 = vpop.f32.mrf.mxu0
  %v118 = vadd.f32 %v27, %v117
  %v119 = vpop.f32.mrf.mxu0
  %120 = vmatprep.mubr.f32.mxu0 0.0
  %121 = vmatmul.mubr.f32.gmra.mxu0 %v39
  %v122 = vpop.f32.mrf.mxu0
  %v123 = vadd.f32 %v27, %v122
  %v124 = vpop.f32.mrf.mxu0
  %125 = vdwg.mxu0
  %v126 = vlaneseq
  %v127 = vand.u32 %v126, 127
  %vm128 = vcmp.ge.s32.totalorder %v127, 64
  %vm129 = vcmp.lt.s32.totalorder %v127, 96
  %vm130 = vmand %vm128, %vm129
  %v131 = vxor.u32 %v108, 2147483648
  %v132 = vmul.f32 %v131, 1.442695
  %v133 = vpow.pop %v132
  %v134 = vadd.f32 %v133, 1.0
  %v135 = vrcp.pop %v134
  %v136 = vmul.f32 1.0, %v135
  %v137 = vmul.f32 %v136, 2.0
  %v138 = vsub.f32 %v137, 1.0
  %v139 = vsel %vm130, %v138, %v136
  %141 = vrot.lane.b32.xlu0 %v139, 64
  %v142 = vpop.permute.xlu0 %141
  %v144 = vmul.f32 %v139, %v142
  %v145 = vtanh.pop %v144
  %147 = vrot.lane.b32.xlu0 %v145, 96
  %v148 = vpop.permute.xlu0 %147
  %v150 = vmul.f32 %v139, %v148
  %152 = vrot.lane.b32.xlu0 %v150, 32
  %v153 = vpop.permute.xlu0 %152
  %vm154 = vcmask 261120
  %v155 = vsel %vm154, %v153, 0
  %157 = vmatprep.subr.mxu0 0.0
  %158 = vmatpush1.msra.mxu0 0.0
  %159 = vmatprep.subr.mxu0 0.0
  %160 = vmatpush1.msra.mxu0 0.0
  %161 = vmatprep.subr.mxu0 0.0
  %162 = vmatpush1.msra.mxu0 0.0
  %163 = vmatprep.subr.mxu0 0.0
  %164 = vmatpush1.msra.mxu0 0.0
  %165 = vmatprep.subr.mxu0 0.0
  %166 = vmatpush1.msra.mxu0 0.0
  %167 = vmatprep.subr.mxu0 0.0
  %168 = vmatpush1.msra.mxu0 0.0
  %169 = vmatprep.subr.mxu0 0.0
  %170 = vmatpush1.msra.mxu0 0.0
  %171 = vmatprep.subr.mxu0 0.0
  %172 = vmatpush1.msra.mxu0 0.0
  %173 = vmatprep.subr.mxu0 0.0
  %174 = vmatpush1.msra.mxu0 0.0
  %175 = vmatprep.subr.mxu0 0.0
  %176 = vmatpush1.msra.mxu0 0.0
  %177 = vmatprep.subr.mxu0 0.0
  %178 = vmatpush1.msra.mxu0 0.0
  %179 = vmatprep.subr.mxu0 0.0
  %180 = vmatpush1.msra.mxu0 0.0
  %181 = vmatprep.subr.mxu0 0.0
  %182 = vmatpush1.msra.mxu0 %v18
  %183 = vmatprep.subr.mxu0 0.0
  %184 = vmatpush1.msra.mxu0 %v17
  %185 = vmatprep.subr.mxu0 0.0
  %186 = vmatpush1.msra.mxu0 %v16
  %187 = vmatprep.subr.mxu0 0.0
  %188 = vmatpush1.msra.mxu0 %v15
  %189 = vmatprep.subr.mxu0 0.0
  %190 = vmatpush2.msra.mxu0 0.0
  %191 = vmatprep.subr.mxu0 0.0
  %192 = vmatpush2.msra.mxu0 0.0
  %193 = vmatprep.subr.mxu0 0.0
  %194 = vmatpush2.msra.mxu0 0.0
  %195 = vmatprep.subr.mxu0 0.0
  %196 = vmatpush2.msra.mxu0 0.0
  %197 = vmatprep.subr.mxu0 0.0
  %198 = vmatpush2.msra.mxu0 0.0
  %199 = vmatprep.subr.mxu0 0.0
  %200 = vmatpush2.msra.mxu0 0.0
  %201 = vmatprep.subr.mxu0 0.0
  %202 = vmatpush2.msra.mxu0 0.0
  %203 = vmatprep.subr.mxu0 0.0
  %204 = vmatpush2.msra.mxu0 0.0
  %205 = vmatprep.subr.mxu0 0.0
  %206 = vmatpush2.msra.mxu0 0.0
  %207 = vmatprep.subr.mxu0 0.0
  %208 = vmatpush2.msra.mxu0 0.0
  %209 = vmatprep.subr.mxu0 0.0
  %210 = vmatpush2.msra.mxu0 0.0
  %211 = vmatprep.subr.mxu0 0.0
  %212 = vmatpush2.msra.mxu0 0.0
  %213 = vmatprep.subr.mxu0 0.0
  %214 = vmatpush2.msra.mxu0 0.0
  %215 = vmatprep.subr.mxu0 0.0
  %216 = vmatpush2.msra.mxu0 0.0
  %217 = vmatprep.subr.mxu0 0.0
  %218 = vmatpush2.msra.mxu0 0.0
  %219 = vmatprep.subr.mxu0 0.0
  %220 = vmatpush2.msra.mxu0 0.0
  %221 = vmatprep.mubr.f32.mxu0 0.0
  %222 = vmatmul.mubr.f32.gmra.mxu0 %v155
  %v223 = vpop.f32.mrf.mxu0
  %v224 = vadd.f32 0.0, %v223
  %v225 = vpop.f32.mrf.mxu0
  %226 = vdwg.mxu0
  %v228 = vrot.slane %v224, 4
  %v230 = vadd.f32 %v108, %v228
  %v231 = vxor.u32 %v230, 2147483648
  %v232 = vmul.f32 %v231, 1.442695
  %v233 = vpow.pop %v232
  %v234 = vadd.f32 %v233, 1.0
  %v235 = vrcp.pop %v234
  %v236 = vmul.f32 1.0, %v235
  %v237 = vmul.f32 %v236, 2.0
  %v238 = vsub.f32 %v237, 1.0
  %v239 = vsel %vm130, %v238, %v236
  %v241 = vrot.slane %v144, 4
  %242 = vrot.lane.b32.xlu0 %v241, 32
  %v243 = vpop.permute.xlu0 %242
  %v245 = vmul.f32 %v239, %v243
  %247 = vrot.lane.b32.xlu0 %v239, 64
  %v248 = vpop.permute.xlu0 %247
  %v250 = vmul.f32 %v239, %v248
  %252 = vrot.lane.b32.xlu0 %v250, 32
  %v253 = vpop.permute.xlu0 %252
  %v255 = vadd.f32 %v245, %v253
  %v256 = vtanh.pop %v255
  %258 = vrot.lane.b32.xlu0 %v256, 64
  %v259 = vpop.permute.xlu0 %258
  %v261 = vmul.f32 %v239, %v259
  %v263 = vrot.slane %v261, 4
  %264 = vrot.lane.b32.xlu0 %v263, 32
  %v265 = vpop.permute.xlu0 %264
  %v266 = vsel %vm154, %v265, 0
  %268 = vmatprep.subr.mxu0 0.0
  %269 = vmatpush1.msra.mxu0 0.0
  %270 = vmatprep.subr.mxu0 0.0
  %271 = vmatpush1.msra.mxu0 0.0
  %272 = vmatprep.subr.mxu0 0.0
  %273 = vmatpush1.msra.mxu0 0.0
  %274 = vmatprep.subr.mxu0 0.0
  %275 = vmatpush1.msra.mxu0 0.0
  %276 = vmatprep.subr.mxu0 0.0
  %277 = vmatpush1.msra.mxu0 0.0
  %278 = vmatprep.subr.mxu0 0.0
  %279 = vmatpush1.msra.mxu0 0.0
  %280 = vmatprep.subr.mxu0 0.0
  %281 = vmatpush1.msra.mxu0 0.0
  %282 = vmatprep.subr.mxu0 0.0
  %283 = vmatpush1.msra.mxu0 0.0
  %284 = vmatprep.subr.mxu0 0.0
  %285 = vmatpush1.msra.mxu0 0.0
  %286 = vmatprep.subr.mxu0 0.0
  %287 = vmatpush1.msra.mxu0 0.0
  %288 = vmatprep.subr.mxu0 0.0
  %289 = vmatpush1.msra.mxu0 0.0
  %290 = vmatprep.subr.mxu0 0.0
  %291 = vmatpush1.msra.mxu0 0.0
  %292 = vmatprep.subr.mxu0 0.0
  %293 = vmatpush1.msra.mxu0 %v18
  %294 = vmatprep.subr.mxu0 0.0
  %295 = vmatpush1.msra.mxu0 %v17
  %296 = vmatprep.subr.mxu0 0.0
  %297 = vmatpush1.msra.mxu0 %v16
  %298 = vmatprep.subr.mxu0 0.0
  %299 = vmatpush1.msra.mxu0 %v15
  %300 = vmatprep.subr.mxu0 0.0
  %301 = vmatpush2.msra.mxu0 0.0
  %302 = vmatprep.subr.mxu0 0.0
  %303 = vmatpush2.msra.mxu0 0.0
  %304 = vmatprep.subr.mxu0 0.0
  %305 = vmatpush2.msra.mxu0 0.0
  %306 = vmatprep.subr.mxu0 0.0
  %307 = vmatpush2.msra.mxu0 0.0
  %308 = vmatprep.subr.mxu0 0.0
  %309 = vmatpush2.msra.mxu0 0.0
  %310 = vmatprep.subr.mxu0 0.0
  %311 = vmatpush2.msra.mxu0 0.0
  %312 = vmatprep.subr.mxu0 0.0
  %313 = vmatpush2.msra.mxu0 0.0
  %314 = vmatprep.subr.mxu0 0.0
  %315 = vmatpush2.msra.mxu0 0.0
  %316 = vmatprep.subr.mxu0 0.0
  %317 = vmatpush2.msra.mxu0 0.0
  %318 = vmatprep.subr.mxu0 0.0
  %319 = vmatpush2.msra.mxu0 0.0
  %320 = vmatprep.subr.mxu0 0.0
  %321 = vmatpush2.msra.mxu0 0.0
  %322 = vmatprep.subr.mxu0 0.0
  %323 = vmatpush2.msra.mxu0 0.0
  %324 = vmatprep.subr.mxu0 0.0
  %325 = vmatpush2.msra.mxu0 0.0
  %326 = vmatprep.subr.mxu0 0.0
  %327 = vmatpush2.msra.mxu0 0.0
  %328 = vmatprep.subr.mxu0 0.0
  %329 = vmatpush2.msra.mxu0 0.0
  %330 = vmatprep.subr.mxu0 0.0
  %331 = vmatpush2.msra.mxu0 0.0
  %332 = vmatprep.mubr.f32.mxu0 0.0
  %333 = vmatmul.mubr.f32.gmra.mxu0 %v266
  %v334 = vpop.f32.mrf.mxu0
  %v335 = vadd.f32 0.0, %v334
  %v336 = vpop.f32.mrf.mxu0
  %337 = vdwg.mxu0
  %v338 = vadd.f32 %v113, %v335
  %v339 = vxor.u32 %v338, 2147483648
  %v340 = vmul.f32 %v339, 1.442695
  %v341 = vpow.pop %v340
  %v342 = vadd.f32 %v341, 1.0
  %v343 = vrcp.pop %v342
  %v344 = vmul.f32 1.0, %v343
  %v345 = vmul.f32 %v344, 2.0
  %v346 = vsub.f32 %v345, 1.0
  %v347 = vsel %vm130, %v346, %v344
  %v349 = vrot.slane %v255, 4
  %v351 = vmul.f32 %v347, %v349
  %353 = vrot.lane.b32.xlu0 %v347, 64
  %v354 = vpop.permute.xlu0 %353
  %v356 = vmul.f32 %v347, %v354
  %358 = vrot.lane.b32.xlu0 %v356, 32
  %v359 = vpop.permute.xlu0 %358
  %v361 = vadd.f32 %v351, %v359
  %v362 = vtanh.pop %v361
  %364 = vrot.lane.b32.xlu0 %v362, 64
  %v365 = vpop.permute.xlu0 %364
  %v367 = vmul.f32 %v347, %v365
  %369 = vrot.lane.b32.xlu0 %v367, 32
  %v370 = vpop.permute.xlu0 %369
  %v371 = vsel %vm154, %v370, 0
  %373 = vmatprep.subr.mxu0 0.0
  %374 = vmatpush1.msra.mxu0 0.0
  %375 = vmatprep.subr.mxu0 0.0
  %376 = vmatpush1.msra.mxu0 0.0
  %377 = vmatprep.subr.mxu0 0.0
  %378 = vmatpush1.msra.mxu0 0.0
  %379 = vmatprep.subr.mxu0 0.0
  %380 = vmatpush1.msra.mxu0 0.0
  %381 = vmatprep.subr.mxu0 0.0
  %382 = vmatpush1.msra.mxu0 0.0
  %383 = vmatprep.subr.mxu0 0.0
  %384 = vmatpush1.msra.mxu0 0.0
  %385 = vmatprep.subr.mxu0 0.0
  %386 = vmatpush1.msra.mxu0 0.0
  %387 = vmatprep.subr.mxu0 0.0
  %388 = vmatpush1.msra.mxu0 0.0
  %389 = vmatprep.subr.mxu0 0.0
  %390 = vmatpush1.msra.mxu0 0.0
  %391 = vmatprep.subr.mxu0 0.0
  %392 = vmatpush1.msra.mxu0 0.0
  %393 = vmatprep.subr.mxu0 0.0
  %394 = vmatpush1.msra.mxu0 0.0
  %395 = vmatprep.subr.mxu0 0.0
  %396 = vmatpush1.msra.mxu0 0.0
  %397 = vmatprep.subr.mxu0 0.0
  %398 = vmatpush1.msra.mxu0 %v18
  %399 = vmatprep.subr.mxu0 0.0
  %400 = vmatpush1.msra.mxu0 %v17
  %401 = vmatprep.subr.mxu0 0.0
  %402 = vmatpush1.msra.mxu0 %v16
  %403 = vmatprep.subr.mxu0 0.0
  %404 = vmatpush1.msra.mxu0 %v15
  %405 = vmatprep.subr.mxu0 0.0
  %406 = vmatpush2.msra.mxu0 0.0
  %407 = vmatprep.subr.mxu0 0.0
  %408 = vmatpush2.msra.mxu0 0.0
  %409 = vmatprep.subr.mxu0 0.0
  %410 = vmatpush2.msra.mxu0 0.0
  %411 = vmatprep.subr.mxu0 0.0
  %412 = vmatpush2.msra.mxu0 0.0
  %413 = vmatprep.subr.mxu0 0.0
  %414 = vmatpush2.msra.mxu0 0.0
  %415 = vmatprep.subr.mxu0 0.0
  %416 = vmatpush2.msra.mxu0 0.0
  %417 = vmatprep.subr.mxu0 0.0
  %418 = vmatpush2.msra.mxu0 0.0
  %419 = vmatprep.subr.mxu0 0.0
  %420 = vmatpush2.msra.mxu0 0.0
  %421 = vmatprep.subr.mxu0 0.0
  %422 = vmatpush2.msra.mxu0 0.0
  %423 = vmatprep.subr.mxu0 0.0
  %424 = vmatpush2.msra.mxu0 0.0
  %425 = vmatprep.subr.mxu0 0.0
  %426 = vmatpush2.msra.mxu0 0.0
  %427 = vmatprep.subr.mxu0 0.0
  %428 = vmatpush2.msra.mxu0 0.0
  %429 = vmatprep.subr.mxu0 0.0
  %430 = vmatpush2.msra.mxu0 0.0
  %431 = vmatprep.subr.mxu0 0.0
  %432 = vmatpush2.msra.mxu0 0.0
  %433 = vmatprep.subr.mxu0 0.0
  %434 = vmatpush2.msra.mxu0 0.0
  %435 = vmatprep.subr.mxu0 0.0
  %436 = vmatpush2.msra.mxu0 0.0
  %437 = vmatprep.mubr.f32.mxu0 0.0
  %438 = vmatmul.mubr.f32.gmra.mxu0 %v371
  %v439 = vpop.f32.mrf.mxu0
  %v440 = vadd.f32 0.0, %v439
  %v441 = vpop.f32.mrf.mxu0
  %442 = vdwg.mxu0
  %v444 = vrot.slane %v440, 4
  %v446 = vadd.f32 %v113, %v444
  %v447 = vxor.u32 %v446, 2147483648
  %v448 = vmul.f32 %v447, 1.442695
  %v449 = vpow.pop %v448
  %v450 = vadd.f32 %v449, 1.0
  %v451 = vrcp.pop %v450
  %v452 = vmul.f32 1.0, %v451
  %v453 = vmul.f32 %v452, 2.0
  %v454 = vsub.f32 %v453, 1.0
  %v455 = vsel %vm130, %v454, %v452
  %v457 = vrot.slane %v361, 4
  %v459 = vmul.f32 %v455, %v457
  %461 = vrot.lane.b32.xlu0 %v455, 64
  %v462 = vpop.permute.xlu0 %461
  %v464 = vmul.f32 %v455, %v462
  %466 = vrot.lane.b32.xlu0 %v464, 32
  %v467 = vpop.permute.xlu0 %466
  %v469 = vadd.f32 %v459, %v467
  %v470 = vtanh.pop %v469
  %472 = vrot.lane.b32.xlu0 %v470, 64
  %v473 = vpop.permute.xlu0 %472
  %v475 = vmul.f32 %v455, %v473
  %v477 = vrot.slane %v475, 4
  %478 = vrot.lane.b32.xlu0 %v477, 32
  %v479 = vpop.permute.xlu0 %478
  %v480 = vsel %vm154, %v479, 0
  %482 = vmatprep.subr.mxu0 0.0
  %483 = vmatpush1.msra.mxu0 0.0
  %484 = vmatprep.subr.mxu0 0.0
  %485 = vmatpush1.msra.mxu0 0.0
  %486 = vmatprep.subr.mxu0 0.0
  %487 = vmatpush1.msra.mxu0 0.0
  %488 = vmatprep.subr.mxu0 0.0
  %489 = vmatpush1.msra.mxu0 0.0
  %490 = vmatprep.subr.mxu0 0.0
  %491 = vmatpush1.msra.mxu0 0.0
  %492 = vmatprep.subr.mxu0 0.0
  %493 = vmatpush1.msra.mxu0 0.0
  %494 = vmatprep.subr.mxu0 0.0
  %495 = vmatpush1.msra.mxu0 0.0
  %496 = vmatprep.subr.mxu0 0.0
  %497 = vmatpush1.msra.mxu0 0.0
  %498 = vmatprep.subr.mxu0 0.0
  %499 = vmatpush1.msra.mxu0 0.0
  %500 = vmatprep.subr.mxu0 0.0
  %501 = vmatpush1.msra.mxu0 0.0
  %502 = vmatprep.subr.mxu0 0.0
  %503 = vmatpush1.msra.mxu0 0.0
  %504 = vmatprep.subr.mxu0 0.0
  %505 = vmatpush1.msra.mxu0 0.0
  %506 = vmatprep.subr.mxu0 0.0
  %507 = vmatpush1.msra.mxu0 %v18
  %508 = vmatprep.subr.mxu0 0.0
  %509 = vmatpush1.msra.mxu0 %v17
  %510 = vmatprep.subr.mxu0 0.0
  %511 = vmatpush1.msra.mxu0 %v16
  %512 = vmatprep.subr.mxu0 0.0
  %513 = vmatpush1.msra.mxu0 %v15
  %514 = vmatprep.subr.mxu0 0.0
  %515 = vmatpush2.msra.mxu0 0.0
  %516 = vmatprep.subr.mxu0 0.0
  %517 = vmatpush2.msra.mxu0 0.0
  %518 = vmatprep.subr.mxu0 0.0
  %519 = vmatpush2.msra.mxu0 0.0
  %520 = vmatprep.subr.mxu0 0.0
  %521 = vmatpush2.msra.mxu0 0.0
  %522 = vmatprep.subr.mxu0 0.0
  %523 = vmatpush2.msra.mxu0 0.0
  %524 = vmatprep.subr.mxu0 0.0
  %525 = vmatpush2.msra.mxu0 0.0
  %526 = vmatprep.subr.mxu0 0.0
  %527 = vmatpush2.msra.mxu0 0.0
  %528 = vmatprep.subr.mxu0 0.0
  %529 = vmatpush2.msra.mxu0 0.0
  %530 = vmatprep.subr.mxu0 0.0
  %531 = vmatpush2.msra.mxu0 0.0
  %532 = vmatprep.subr.mxu0 0.0
  %533 = vmatpush2.msra.mxu0 0.0
  %534 = vmatprep.subr.mxu0 0.0
  %535 = vmatpush2.msra.mxu0 0.0
  %536 = vmatprep.subr.mxu0 0.0
  %537 = vmatpush2.msra.mxu0 0.0
  %538 = vmatprep.subr.mxu0 0.0
  %539 = vmatpush2.msra.mxu0 0.0
  %540 = vmatprep.subr.mxu0 0.0
  %541 = vmatpush2.msra.mxu0 0.0
  %542 = vmatprep.subr.mxu0 0.0
  %543 = vmatpush2.msra.mxu0 0.0
  %544 = vmatprep.subr.mxu0 0.0
  %545 = vmatpush2.msra.mxu0 0.0
  %546 = vmatprep.mubr.f32.mxu0 0.0
  %547 = vmatmul.mubr.f32.gmra.mxu0 %v480
  %v548 = vpop.f32.mrf.mxu0
  %v549 = vadd.f32 0.0, %v548
  %v550 = vpop.f32.mrf.mxu0
  %551 = vdwg.mxu0
  %v552 = vadd.f32 %v118, %v549
  %v553 = vxor.u32 %v552, 2147483648
  %v554 = vmul.f32 %v553, 1.442695
  %v555 = vpow.pop %v554
  %v556 = vadd.f32 %v555, 1.0
  %v557 = vrcp.pop %v556
  %v558 = vmul.f32 1.0, %v557
  %v559 = vmul.f32 %v558, 2.0
  %v560 = vsub.f32 %v559, 1.0
  %v561 = vsel %vm130, %v560, %v558
  %v563 = vrot.slane %v469, 4
  %v565 = vmul.f32 %v561, %v563
  %567 = vrot.lane.b32.xlu0 %v561, 64
  %v568 = vpop.permute.xlu0 %567
  %v570 = vmul.f32 %v561, %v568
  %572 = vrot.lane.b32.xlu0 %v570, 32
  %v573 = vpop.permute.xlu0 %572
  %v575 = vadd.f32 %v565, %v573
  %v576 = vtanh.pop %v575
  %578 = vrot.lane.b32.xlu0 %v576, 64
  %v579 = vpop.permute.xlu0 %578
  %v581 = vmul.f32 %v561, %v579
  %583 = vrot.lane.b32.xlu0 %v581, 32
  %v584 = vpop.permute.xlu0 %583
  %v585 = vsel %vm154, %v584, 0
  %587 = vmatprep.subr.mxu0 0.0
  %588 = vmatpush1.msra.mxu0 0.0
  %589 = vmatprep.subr.mxu0 0.0
  %590 = vmatpush1.msra.mxu0 0.0
  %591 = vmatprep.subr.mxu0 0.0
  %592 = vmatpush1.msra.mxu0 0.0
  %593 = vmatprep.subr.mxu0 0.0
  %594 = vmatpush1.msra.mxu0 0.0
  %595 = vmatprep.subr.mxu0 0.0
  %596 = vmatpush1.msra.mxu0 0.0
  %597 = vmatprep.subr.mxu0 0.0
  %598 = vmatpush1.msra.mxu0 0.0
  %599 = vmatprep.subr.mxu0 0.0
  %600 = vmatpush1.msra.mxu0 0.0
  %601 = vmatprep.subr.mxu0 0.0
  %602 = vmatpush1.msra.mxu0 0.0
  %603 = vmatprep.subr.mxu0 0.0
  %604 = vmatpush1.msra.mxu0 0.0
  %605 = vmatprep.subr.mxu0 0.0
  %606 = vmatpush1.msra.mxu0 0.0
  %607 = vmatprep.subr.mxu0 0.0
  %608 = vmatpush1.msra.mxu0 0.0
  %609 = vmatprep.subr.mxu0 0.0
  %610 = vmatpush1.msra.mxu0 0.0
  %611 = vmatprep.subr.mxu0 0.0
  %612 = vmatpush1.msra.mxu0 %v18
  %613 = vmatprep.subr.mxu0 0.0
  %614 = vmatpush1.msra.mxu0 %v17
  %615 = vmatprep.subr.mxu0 0.0
  %616 = vmatpush1.msra.mxu0 %v16
  %617 = vmatprep.subr.mxu0 0.0
  %618 = vmatpush1.msra.mxu0 %v15
  %619 = vmatprep.subr.mxu0 0.0
  %620 = vmatpush2.msra.mxu0 0.0
  %621 = vmatprep.subr.mxu0 0.0
  %622 = vmatpush2.msra.mxu0 0.0
  %623 = vmatprep.subr.mxu0 0.0
  %624 = vmatpush2.msra.mxu0 0.0
  %625 = vmatprep.subr.mxu0 0.0
  %626 = vmatpush2.msra.mxu0 0.0
  %627 = vmatprep.subr.mxu0 0.0
  %628 = vmatpush2.msra.mxu0 0.0
  %629 = vmatprep.subr.mxu0 0.0
  %630 = vmatpush2.msra.mxu0 0.0
  %631 = vmatprep.subr.mxu0 0.0
  %632 = vmatpush2.msra.mxu0 0.0
  %633 = vmatprep.subr.mxu0 0.0
  %634 = vmatpush2.msra.mxu0 0.0
  %635 = vmatprep.subr.mxu0 0.0
  %636 = vmatpush2.msra.mxu0 0.0
  %637 = vmatprep.subr.mxu0 0.0
  %638 = vmatpush2.msra.mxu0 0.0
  %639 = vmatprep.subr.mxu0 0.0
  %640 = vmatpush2.msra.mxu0 0.0
  %641 = vmatprep.subr.mxu0 0.0
  %642 = vmatpush2.msra.mxu0 0.0
  %643 = vmatprep.subr.mxu0 0.0
  %644 = vmatpush2.msra.mxu0 0.0
  %645 = vmatprep.subr.mxu0 0.0
  %646 = vmatpush2.msra.mxu0 0.0
  %647 = vmatprep.subr.mxu0 0.0
  %648 = vmatpush2.msra.mxu0 0.0
  %649 = vmatprep.subr.mxu0 0.0
  %650 = vmatpush2.msra.mxu0 0.0
  %651 = vmatprep.mubr.f32.mxu0 0.0
  %652 = vmatmul.mubr.f32.gmra.mxu0 %v585
  %v653 = vpop.f32.mrf.mxu0
  %v654 = vadd.f32 0.0, %v653
  %v655 = vpop.f32.mrf.mxu0
  %656 = vdwg.mxu0
  %v658 = vrot.slane %v654, 4
  %v660 = vadd.f32 %v118, %v658
  %v661 = vxor.u32 %v660, 2147483648
  %v662 = vmul.f32 %v661, 1.442695
  %v663 = vpow.pop %v662
  %v664 = vadd.f32 %v663, 1.0
  %v665 = vrcp.pop %v664
  %v666 = vmul.f32 1.0, %v665
  %v667 = vmul.f32 %v666, 2.0
  %v668 = vsub.f32 %v667, 1.0
  %v669 = vsel %vm130, %v668, %v666
  %v671 = vrot.slane %v575, 4
  %v673 = vmul.f32 %v669, %v671
  %675 = vrot.lane.b32.xlu0 %v669, 64
  %v676 = vpop.permute.xlu0 %675
  %v678 = vmul.f32 %v669, %v676
  %680 = vrot.lane.b32.xlu0 %v678, 32
  %v681 = vpop.permute.xlu0 %680
  %v683 = vadd.f32 %v673, %v681
  %v684 = vtanh.pop %v683
  %686 = vrot.lane.b32.xlu0 %v684, 64
  %v687 = vpop.permute.xlu0 %686
  %v689 = vmul.f32 %v669, %v687
  %v691 = vrot.slane %v689, 4
  %692 = vrot.lane.b32.xlu0 %v691, 32
  %v693 = vpop.permute.xlu0 %692
  %v694 = vsel %vm154, %v693, 0
  %696 = vmatprep.subr.mxu0 0.0
  %697 = vmatpush1.msra.mxu0 0.0
  %698 = vmatprep.subr.mxu0 0.0
  %699 = vmatpush1.msra.mxu0 0.0
  %700 = vmatprep.subr.mxu0 0.0
  %701 = vmatpush1.msra.mxu0 0.0
  %702 = vmatprep.subr.mxu0 0.0
  %703 = vmatpush1.msra.mxu0 0.0
  %704 = vmatprep.subr.mxu0 0.0
  %705 = vmatpush1.msra.mxu0 0.0
  %706 = vmatprep.subr.mxu0 0.0
  %707 = vmatpush1.msra.mxu0 0.0
  %708 = vmatprep.subr.mxu0 0.0
  %709 = vmatpush1.msra.mxu0 0.0
  %710 = vmatprep.subr.mxu0 0.0
  %711 = vmatpush1.msra.mxu0 0.0
  %712 = vmatprep.subr.mxu0 0.0
  %713 = vmatpush1.msra.mxu0 0.0
  %714 = vmatprep.subr.mxu0 0.0
  %715 = vmatpush1.msra.mxu0 0.0
  %716 = vmatprep.subr.mxu0 0.0
  %717 = vmatpush1.msra.mxu0 0.0
  %718 = vmatprep.subr.mxu0 0.0
  %719 = vmatpush1.msra.mxu0 0.0
  %720 = vmatprep.subr.mxu0 0.0
  %721 = vmatpush1.msra.mxu0 %v18
  %722 = vmatprep.subr.mxu0 0.0
  %723 = vmatpush1.msra.mxu0 %v17
  %724 = vmatprep.subr.mxu0 0.0
  %725 = vmatpush1.msra.mxu0 %v16
  %726 = vmatprep.subr.mxu0 0.0
  %727 = vmatpush1.msra.mxu0 %v15
  %728 = vmatprep.subr.mxu0 0.0
  %729 = vmatpush2.msra.mxu0 0.0
  %730 = vmatprep.subr.mxu0 0.0
  %731 = vmatpush2.msra.mxu0 0.0
  %732 = vmatprep.subr.mxu0 0.0
  %733 = vmatpush2.msra.mxu0 0.0
  %734 = vmatprep.subr.mxu0 0.0
  %735 = vmatpush2.msra.mxu0 0.0
  %736 = vmatprep.subr.mxu0 0.0
  %737 = vmatpush2.msra.mxu0 0.0
  %738 = vmatprep.subr.mxu0 0.0
  %739 = vmatpush2.msra.mxu0 0.0
  %740 = vmatprep.subr.mxu0 0.0
  %741 = vmatpush2.msra.mxu0 0.0
  %742 = vmatprep.subr.mxu0 0.0
  %743 = vmatpush2.msra.mxu0 0.0
  %744 = vmatprep.subr.mxu0 0.0
  %745 = vmatpush2.msra.mxu0 0.0
  %746 = vmatprep.subr.mxu0 0.0
  %747 = vmatpush2.msra.mxu0 0.0
  %748 = vmatprep.subr.mxu0 0.0
  %749 = vmatpush2.msra.mxu0 0.0
  %750 = vmatprep.subr.mxu0 0.0
  %751 = vmatpush2.msra.mxu0 0.0
  %752 = vmatprep.subr.mxu0 0.0
  %753 = vmatpush2.msra.mxu0 0.0
  %754 = vmatprep.subr.mxu0 0.0
  %755 = vmatpush2.msra.mxu0 0.0
  %756 = vmatprep.subr.mxu0 0.0
  %757 = vmatpush2.msra.mxu0 0.0
  %758 = vmatprep.subr.mxu0 0.0
  %759 = vmatpush2.msra.mxu0 0.0
  %760 = vmatprep.mubr.f32.mxu0 0.0
  %761 = vmatmul.mubr.f32.gmra.mxu0 %v694
  %v762 = vpop.f32.mrf.mxu0
  %v763 = vadd.f32 0.0, %v762
  %v764 = vpop.f32.mrf.mxu0
  %765 = vdwg.mxu0
  %v766 = vadd.f32 %v123, %v763
  %v767 = vxor.u32 %v766, 2147483648
  %v768 = vmul.f32 %v767, 1.442695
  %v769 = vpow.pop %v768
  %v770 = vadd.f32 %v769, 1.0
  %v771 = vrcp.pop %v770
  %v772 = vmul.f32 1.0, %v771
  %v773 = vmul.f32 %v772, 2.0
  %v774 = vsub.f32 %v773, 1.0
  %v775 = vsel %vm130, %v774, %v772
  %v777 = vrot.slane %v683, 4
  %v779 = vmul.f32 %v775, %v777
  %781 = vrot.lane.b32.xlu0 %v775, 64
  %v782 = vpop.permute.xlu0 %781
  %v784 = vmul.f32 %v775, %v782
  %786 = vrot.lane.b32.xlu0 %v784, 32
  %v787 = vpop.permute.xlu0 %786
  %v789 = vadd.f32 %v779, %v787
  %v790 = vtanh.pop %v789
  %792 = vrot.lane.b32.xlu0 %v790, 64
  %v793 = vpop.permute.xlu0 %792
  %v795 = vmul.f32 %v775, %v793
  %797 = vrot.lane.b32.xlu0 %v795, 32
  %v798 = vpop.permute.xlu0 %797
  %v799 = vsel %vm154, %v798, 0
  %801 = vmatprep.subr.mxu0 0.0
  %802 = vmatpush1.msra.mxu0 0.0
  %803 = vmatprep.subr.mxu0 0.0
  %804 = vmatpush1.msra.mxu0 0.0
  %805 = vmatprep.subr.mxu0 0.0
  %806 = vmatpush1.msra.mxu0 0.0
  %807 = vmatprep.subr.mxu0 0.0
  %808 = vmatpush1.msra.mxu0 0.0
  %809 = vmatprep.subr.mxu0 0.0
  %810 = vmatpush1.msra.mxu0 0.0
  %811 = vmatprep.subr.mxu0 0.0
  %812 = vmatpush1.msra.mxu0 0.0
  %813 = vmatprep.subr.mxu0 0.0
  %814 = vmatpush1.msra.mxu0 0.0
  %815 = vmatprep.subr.mxu0 0.0
  %816 = vmatpush1.msra.mxu0 0.0
  %817 = vmatprep.subr.mxu0 0.0
  %818 = vmatpush1.msra.mxu0 0.0
  %819 = vmatprep.subr.mxu0 0.0
  %820 = vmatpush1.msra.mxu0 0.0
  %821 = vmatprep.subr.mxu0 0.0
  %822 = vmatpush1.msra.mxu0 0.0
  %823 = vmatprep.subr.mxu0 0.0
  %824 = vmatpush1.msra.mxu0 0.0
  %825 = vmatprep.subr.mxu0 0.0
  %826 = vmatpush1.msra.mxu0 %v18
  %827 = vmatprep.subr.mxu0 0.0
  %828 = vmatpush1.msra.mxu0 %v17
  %829 = vmatprep.subr.mxu0 0.0
  %830 = vmatpush1.msra.mxu0 %v16
  %831 = vmatprep.subr.mxu0 0.0
  %832 = vmatpush1.msra.mxu0 %v15
  %833 = vmatprep.subr.mxu0 0.0
  %834 = vmatpush2.msra.mxu0 0.0
  %835 = vmatprep.subr.mxu0 0.0
  %836 = vmatpush2.msra.mxu0 0.0
  %837 = vmatprep.subr.mxu0 0.0
  %838 = vmatpush2.msra.mxu0 0.0
  %839 = vmatprep.subr.mxu0 0.0
  %840 = vmatpush2.msra.mxu0 0.0
  %841 = vmatprep.subr.mxu0 0.0
  %842 = vmatpush2.msra.mxu0 0.0
  %843 = vmatprep.subr.mxu0 0.0
  %844 = vmatpush2.msra.mxu0 0.0
  %845 = vmatprep.subr.mxu0 0.0
  %846 = vmatpush2.msra.mxu0 0.0
  %847 = vmatprep.subr.mxu0 0.0
  %848 = vmatpush2.msra.mxu0 0.0
  %849 = vmatprep.subr.mxu0 0.0
  %850 = vmatpush2.msra.mxu0 0.0
  %851 = vmatprep.subr.mxu0 0.0
  %852 = vmatpush2.msra.mxu0 0.0
  %853 = vmatprep.subr.mxu0 0.0
  %854 = vmatpush2.msra.mxu0 0.0
  %855 = vmatprep.subr.mxu0 0.0
  %856 = vmatpush2.msra.mxu0 0.0
  %857 = vmatprep.subr.mxu0 0.0
  %858 = vmatpush2.msra.mxu0 0.0
  %859 = vmatprep.subr.mxu0 0.0
  %860 = vmatpush2.msra.mxu0 0.0
  %861 = vmatprep.subr.mxu0 0.0
  %862 = vmatpush2.msra.mxu0 0.0
  %863 = vmatprep.subr.mxu0 0.0
  %864 = vmatpush2.msra.mxu0 0.0
  %865 = vmatprep.mubr.f32.mxu0 0.0
  %866 = vmatmul.mubr.f32.gmra.mxu0 %v799
  %v867 = vpop.f32.mrf.mxu0
  %v868 = vadd.f32 0.0, %v867
  %v869 = vpop.f32.mrf.mxu0
  %870 = vdwg.mxu0
  %v872 = vrot.slane %v868, 4
  %v874 = vadd.f32 %v123, %v872
  %v875 = vxor.u32 %v874, 2147483648
  %v876 = vmul.f32 %v875, 1.442695
  %v877 = vpow.pop %v876
  %v878 = vadd.f32 %v877, 1.0
  %v879 = vrcp.pop %v878
  %v880 = vmul.f32 1.0, %v879
  %v881 = vmul.f32 %v880, 2.0
  %v882 = vsub.f32 %v881, 1.0
  %v883 = vsel %vm130, %v882, %v880
  %v885 = vrot.slane %v789, 4
  %v887 = vmul.f32 %v883, %v885
  %889 = vrot.lane.b32.xlu0 %v883, 64
  %v890 = vpop.permute.xlu0 %889
  %v892 = vmul.f32 %v883, %v890
  %894 = vrot.lane.b32.xlu0 %v892, 32
  %v895 = vpop.permute.xlu0 %894
  %v897 = vadd.f32 %v887, %v895
  %v898 = vtanh.pop %v897
  %900 = vrot.lane.b32.xlu0 %v898, 64
  %v901 = vpop.permute.xlu0 %900
  %v903 = vmul.f32 %v883, %v901
  %v904 = vld [vmem:[%s2] sm:$0xff]
  %v905 = vld [vmem:[%s2 + $0x8] sm:$0xff]
  %v906 = vld [vmem:[%s2 + $0x10] sm:$0xff]
  %v907 = vld [vmem:[%s2 + $0x18] sm:$0xff]
  %v908 = vld [vmem:[%s2 + $0x20] sm:$0x1]
  %v909 = vlaneseq
  %v910 = vshrl.u32 %v909, 7
  %v911 = vsub.s32 0, %v910
  %v912 = vrot.slane %v908, %v911
  %v914 = vrot.slane %v903, 4
  %915 = vrot.lane.b32.xlu0 %v914, 32
  %v916 = vpop.permute.xlu0 %915
  %v917 = vsel %vm154, %v916, 0
  %919 = vmatprep.subr.mxu0 0.0
  %920 = vmatpush1.msra.mxu0 0.0
  %921 = vmatprep.subr.mxu0 0.0
  %922 = vmatpush1.msra.mxu0 0.0
  %923 = vmatprep.subr.mxu0 0.0
  %924 = vmatpush1.msra.mxu0 0.0
  %925 = vmatprep.subr.mxu0 0.0
  %926 = vmatpush1.msra.mxu0 0.0
  %927 = vmatprep.subr.mxu0 0.0
  %928 = vmatpush1.msra.mxu0 0.0
  %929 = vmatprep.subr.mxu0 0.0
  %930 = vmatpush1.msra.mxu0 0.0
  %931 = vmatprep.subr.mxu0 0.0
  %932 = vmatpush1.msra.mxu0 0.0
  %933 = vmatprep.subr.mxu0 0.0
  %934 = vmatpush1.msra.mxu0 0.0
  %935 = vmatprep.subr.mxu0 0.0
  %936 = vmatpush1.msra.mxu0 0.0
  %937 = vmatprep.subr.mxu0 0.0
  %938 = vmatpush1.msra.mxu0 0.0
  %939 = vmatprep.subr.mxu0 0.0
  %940 = vmatpush1.msra.mxu0 0.0
  %941 = vmatprep.subr.mxu0 0.0
  %942 = vmatpush1.msra.mxu0 0.0
  %943 = vmatprep.subr.mxu0 0.0
  %944 = vmatpush1.msra.mxu0 %v907
  %945 = vmatprep.subr.mxu0 0.0
  %946 = vmatpush1.msra.mxu0 %v906
  %947 = vmatprep.subr.mxu0 0.0
  %948 = vmatpush1.msra.mxu0 %v905
  %949 = vmatprep.subr.mxu0 0.0
  %950 = vmatpush1.msra.mxu0 %v904
  %951 = vmatprep.subr.mxu0 0.0
  %952 = vmatpush2.msra.mxu0 0.0
  %953 = vmatprep.subr.mxu0 0.0
  %954 = vmatpush2.msra.mxu0 0.0
  %955 = vmatprep.subr.mxu0 0.0
  %956 = vmatpush2.msra.mxu0 0.0
  %957 = vmatprep.subr.mxu0 0.0
  %958 = vmatpush2.msra.mxu0 0.0
  %959 = vmatprep.subr.mxu0 0.0
  %960 = vmatpush2.msra.mxu0 0.0
  %961 = vmatprep.subr.mxu0 0.0
  %962 = vmatpush2.msra.mxu0 0.0
  %963 = vmatprep.subr.mxu0 0.0
  %964 = vmatpush2.msra.mxu0 0.0
  %965 = vmatprep.subr.mxu0 0.0
  %966 = vmatpush2.msra.mxu0 0.0
  %967 = vmatprep.subr.mxu0 0.0
  %968 = vmatpush2.msra.mxu0 0.0
  %969 = vmatprep.subr.mxu0 0.0
  %970 = vmatpush2.msra.mxu0 0.0
  %971 = vmatprep.subr.mxu0 0.0
  %972 = vmatpush2.msra.mxu0 0.0
  %973 = vmatprep.subr.mxu0 0.0
  %974 = vmatpush2.msra.mxu0 0.0
  %975 = vmatprep.subr.mxu0 0.0
  %976 = vmatpush2.msra.mxu0 0.0
  %977 = vmatprep.subr.mxu0 0.0
  %978 = vmatpush2.msra.mxu0 0.0
  %979 = vmatprep.subr.mxu0 0.0
  %980 = vmatpush2.msra.mxu0 0.0
  %981 = vmatprep.subr.mxu0 0.0
  %982 = vmatpush2.msra.mxu0 0.0
  %983 = vmatprep.mubr.f32.mxu0 0.0
  %984 = vmatmul.mubr.f32.gmra.mxu0 %v917
  %v985 = vpop.f32.mrf.mxu0
  %v986 = vadd.f32 %v912, %v985
  %v987 = vpop.f32.mrf.mxu0
  %988 = vdwg.mxu0
  %989 = vrot.lane.b32.xlu0 %v903, 32
  %v990 = vpop.permute.xlu0 %989
  %v993 = vrot.slane %v986, 4
  %994 = vrot.lane.b32.xlu0 %v993, 64
  %v995 = vpop.permute.xlu0 %994
  %v997 = vsel %vm154, %v990, %v897
  %vm998 = vcmask 523264
  %v999 = vsel %vm998, %v997, %v995
  %vm1000 = vcmask 588800
  %v1001 = vsel %vm1000, %v999, 0.0
  %1002 = vst [vmem:[%s3 - $0x4] sm:$0xf0] %v1001
  // Predicated region
  $region14: #{weather_model_forward.1} parent=0 // pred_check
    _
  $region15: #{weather_model_forward.1} parent=0 // pred_check_branch
    %1004 = sbr.rel (0) target = $region17
  $region16: #{weather_model_forward.1} parent=0 // pred_region
    _
  $region17: #{weather_model_forward.1} parent=0 // pred_fallthru
    _
  // Predicated region
  $region18: #{weather_model_forward.1} parent=0 // pred_check
    _
  $region19: #{weather_model_forward.1} parent=0 // pred_check_branch
    %1006 = sbr.rel (0) target = $region21
  $region20: #{weather_model_forward.1} parent=0 // pred_region
    _
  $region21: #{weather_model_forward.1} parent=0 // pred_fallthru
    _

</llo_original>
